<compile_context>
chip_gen: v7x
topology: tpu7x:2x2x1
jax: 0.10.0
libtpu: 0.0.40
codegen_flags: <defaults>
</compile_context>

<pallas_src>
import functools

import jax
import jax.numpy as jnp
from jax.experimental import pallas as pl
from jax.experimental.pallas import tpu as pltpu


# -----------------------------------------------------------------------------
# Prologue kernel: global stats + 3-tap conv + bf16 residual (one-time, whole x)
# -----------------------------------------------------------------------------
def ma_prologue_kernel(cp_ref, x_ref, res_ref, mu_ref, *, n_real):
    # cp_ref:  (4,)        f32  SMEM  [w0, w1, w2, conv_bias]
    # x_ref:   (B_pad, L)  f32  VMEM  flattened batch_x (zero-padded rows)
    # res_ref: (B_pad, L)  bf16 VMEM  output residual (matmul LHS, cast once here)
    # mu_ref:  (1, 1)      f32  VMEM  output global mean
    x = x_ref[...]
    L = x.shape[1]
    w0, w1, w2, cb = cp_ref[0], cp_ref[1], cp_ref[2], cp_ref[3]

    # ---- global mean / unbiased std over the REAL elements, single pass.
    # Padded rows are zero so they do not perturb the sums; n_real is the true
    # element count of batch_x.
    s1 = jnp.sum(jnp.sum(x, axis=1, keepdims=True), axis=0, keepdims=True)
    s2 = jnp.sum(jnp.sum(x * x, axis=1, keepdims=True), axis=0, keepdims=True)
    mu = s1 / n_real                                     # (1, 1)
    denom = max(n_real - 1.0, 1.0)                       # guard 1-element input
    var = (s2 - n_real * mu * mu) / denom                # ddof=1
    var = jnp.maximum(var, 1e-12)                        # f32 cancellation guard
    inv_std = jax.lax.rsqrt(var)                         # (1, 1)
    mu_ref[...] = mu

    # ---- Conv1d(1,1,k=3,pad=1): two XLU rolls; the wrapped boundary columns
    # are zeroed with a lane mask.  This is one-time prologue work (O(B*L) VPU
    # ops) and keeps the residual store a single full-width unmasked vst.
    lane = jax.lax.broadcasted_iota(jnp.int32, x.shape, 1)
    x_m1 = jnp.where(lane == 0, 0.0, pltpu.roll(x, shift=1, axis=1))         # x[i-1]
    x_p1 = jnp.where(lane == L - 1, 0.0, pltpu.roll(x, shift=L - 1, axis=1))  # x[i+1]
    mean_c = w0 * x_m1 + w1 * x + w2 * x_p1 + cb
    res_ref[...] = ((x - mean_c) * inv_std).astype(res_ref.dtype)


# -----------------------------------------------------------------------------
# Main kernel: streamed bf16 MXU matmul over lane-dense OUT tiles (parallel grid)
# -----------------------------------------------------------------------------
def ma_matmul_kernel(mu_ref, res_ref, wt_ref, bl_ref, o_ref):
    # mu_ref:  (1, 1)          f32  SMEM  global mean (scalar read)
    # res_ref: (B_pad, L)      bf16 VMEM  residual (resident across all tiles)
    # wt_ref:  (L, N_TILE)     bf16 VMEM  streamed, pre-transposed weight block
    # bl_ref:  (1, N_TILE)     f32  VMEM  streamed bias block
    # o_ref:   (B_pad, N_TILE) f32  output block
    acc = jnp.dot(res_ref[...], wt_ref[...], preferred_element_type=jnp.float32)
    o_ref[...] = acc + (bl_ref[...] + mu_ref[0, 0])


# -----------------------------------------------------------------------------
# One-time parameter prep + tile sizing
# -----------------------------------------------------------------------------
def _pick_n_tile(L, out_dim, *, max_tile=512, vmem_budget=40 * 1024 * 1024):
    """Largest lane-dense weight tile (multiple of 128, <= max_tile, <= padded
    OUT) whose double-buffered bf16 footprint stays well inside a VMEM budget
    sized for v7x's 64 MiB VMEM (v5e/v6e have 128 MiB, so the same choice is
    safe there)."""
    tile = max(128, min(max_tile, pl.cdiv(out_dim, 128) * 128))
    # Weight double-buffer (2 * L * tile * 2 bytes) dominates per-step VMEM.
    while tile > 128 and 2 * L * tile * 2 > vmem_budget // 2:
        tile -= 128
    return tile


def prepare_ma_params(conv_w, conv_b, lin_w, lin_b, *, n_tile=None):
    """Hoisted out of the per-forward path: transpose + bf16-cast + lane-pad the
    Linear weight, pad the bias, pack the 3-tap conv weights + bias into one
    small f32 row for SMEM."""
    out_dim, L = lin_w.shape
    if n_tile is None:
        n_tile = _pick_n_tile(L, out_dim)
    out_pad = pl.cdiv(out_dim, n_tile) * n_tile
    wt = jnp.transpose(lin_w).astype(jnp.bfloat16)                 # (L, OUT)
    wt = jnp.pad(wt, ((0, 0), (0, out_pad - out_dim)))
    bl = jnp.pad(lin_b.astype(jnp.float32), (0, out_pad - out_dim))
    bl = bl.reshape(1, out_pad)
    cp = jnp.concatenate([conv_w.reshape(3), conv_b.reshape(1)]).astype(jnp.float32)
    return cp, wt, bl, n_tile


# -----------------------------------------------------------------------------
# Forward
# -----------------------------------------------------------------------------
@functools.partial(jax.jit, static_argnames=("pred_len", "n_tile"))
def ma_forward(batch_x, cp, wt, bl, *, pred_len, n_tile):
    """batch_x: (B, S, D); cp/wt/bl/n_tile from prepare_ma_params."""
    B, S, D = batch_x.shape
    L = S * D
    out_dim = pred_len * D
    out_pad = wt.shape[1]
    assert wt.shape[0] == L and out_pad % n_tile == 0 and out_pad >= out_dim

    # Sublane-pad the batch to >= 8 rows; zero rows don't perturb the global
    # sum / sum-of-squares and are sliced off afterwards.
    B_pad = max(8, pl.cdiv(B, 8) * 8)
    x = batch_x.reshape(B, L).astype(jnp.float32)
    x = jnp.pad(x, ((0, B_pad - B), (0, 0)))

    # 48 MiB scoped VMEM: well above the v5e/v6e defaults (16/32 MiB), with
    # headroom under v7x's 64 MiB physical VMEM.
    vmem_limit = 48 * 1024 * 1024

    # ---- prologue: one-shot stats + conv + bf16 residual.
    res, mu = pl.pallas_call(
        functools.partial(ma_prologue_kernel, n_real=float(B * L)),
        out_shape=(jax.ShapeDtypeStruct((B_pad, L), jnp.bfloat16),
                   jax.ShapeDtypeStruct((1, 1), jnp.float32)),
        grid=(1,),
        in_specs=[
            pl.BlockSpec(memory_space=pltpu.MemorySpace.SMEM),   # conv params (scalars)
            pl.BlockSpec((B_pad, L), lambda i: (0, 0)),          # x, fully resident
        ],
        out_specs=[
            pl.BlockSpec((B_pad, L), lambda i: (0, 0)),          # residual (bf16)
            pl.BlockSpec((1, 1), lambda i: (0, 0)),              # global mean
        ],
        compiler_params=pltpu.CompilerParams(
            dimension_semantics=("arbitrary",),
            vmem_limit_bytes=vmem_limit,
        ),
    )(cp, x)

    # ---- main: weight-streaming matmul; OUT tiles are fully independent, so
    # the grid axis is "parallel" (v7x megacore shards it across both TCs).
    out = pl.pallas_call(
        ma_matmul_kernel,
        out_shape=jax.ShapeDtypeStruct((B_pad, out_pad), jnp.float32),
        grid=(out_pad // n_tile,),
        in_specs=[
            pl.BlockSpec(memory_space=pltpu.MemorySpace.SMEM),   # mu scalar
            pl.BlockSpec((B_pad, L), lambda j: (0, 0)),          # residual, resident
            pl.BlockSpec((L, n_tile), lambda j: (0, j)),         # W^T streamed per tile
            pl.BlockSpec((1, n_tile), lambda j: (0, j)),         # bias streamed per tile
        ],
        out_specs=pl.BlockSpec((B_pad, n_tile), lambda j: (0, j)),
        compiler_params=pltpu.CompilerParams(
            dimension_semantics=("parallel",),
            vmem_limit_bytes=vmem_limit,
        ),
    )(mu, res, wt, bl)

    return out[:B, :out_dim].reshape(B, pred_len, D)


# -----------------------------------------------------------------------------
# Pure-JAX f32 reference mirroring the PyTorch forward exactly
# -----------------------------------------------------------------------------
def ma_reference(batch_x, conv_w, conv_b, lin_w, lin_b, pred_len):
    B, S, D = batch_x.shape
    L = S * D
    x = batch_x.reshape(B, L)
    w = conv_w.reshape(3)
    xp = jnp.pad(x, ((0, 0), (1, 1)))
    mean = (w[0] * xp[:, 0:L] + w[1] * xp[:, 1:L + 1]
            + w[2] * xp[:, 2:L + 2] + conv_b[0])
    std = jnp.std(batch_x, ddof=1)
    res = (x - mean) / std
    ma = res @ lin_w.T + lin_b + jnp.mean(batch_x)
    return ma.reshape(-1, pred_len, D)


if __name__ == "__main__":
    # Small shapes consistent with the module.
    B, S, D, P = 2, 8, 4, 8          # batch, seq_len, input_dim, pred_len
    key = jax.random.PRNGKey(0)
    k_x, k_cw, k_cb, k_lw, k_lb = jax.random.split(key, 5)

    batch_x = jax.random.normal(k_x, (B, S, D), dtype=jnp.float32)
    conv_w = jax.random.normal(k_cw, (1, 1, 3), dtype=jnp.float32) * 0.3
    conv_b = jax.random.normal(k_cb, (1,), dtype=jnp.float32) * 0.1
    lin_w = jax.random.normal(k_lw, (P * D, S * D), dtype=jnp.float32) * 0.1
    lin_b = jax.random.normal(k_lb, (P * D,), dtype=jnp.float32) * 0.1

    # Unused forward args of the PyTorch module (batch_x_mark, dec_inp,
    # batch_y_mark, label_len) are intentionally omitted.
    cp, wt, bl, n_tile = prepare_ma_params(conv_w, conv_b, lin_w, lin_b)
    out = ma_forward(batch_x, cp, wt, bl, pred_len=P, n_tile=n_tile)
    out = jax.block_until_ready(out)

    ref = ma_reference(batch_x, conv_w, conv_b, lin_w, lin_b, P)
    assert out.shape == (B, P, D)
    # bf16 MXU operands (f32 accumulation) + bf16 residual -> ~1e-2 error budget.
    assert jnp.allclose(out, ref, atol=5e-2, rtol=5e-2), (
        f"max abs err = {jnp.max(jnp.abs(out - ref))}")

    print("KERNEL_OK")
</pallas_src>

<mosaic_0001>
module attributes {stable_mosaic.version = 11 : i64} {
  func.func @ma_prologue_kernel(%arg0: i32, %arg1: memref<4xf32, #tpu.memory_space<smem>>, %arg2: memref<8x32xf32, #tpu.memory_space<vmem>>, %arg3: memref<8x32xbf16, #tpu.memory_space<vmem>>, %arg4: memref<1x1xf32, #tpu.memory_space<vmem>>) attributes {dimension_semantics = [#tpu.dimension_semantics<arbitrary>], iteration_bounds = array<i64: 1>, scalar_prefetch = 0 : i64, scratch_operands = 0 : i64, tpu.core_type = #tpu.core_type<tc>, window_params = [{transform_indices = @transform_0, window_bounds = array<i64: 4>}, {pipeline_mode = #tpu.pipeline_mode<synchronous>, transform_indices = @transform_1, window_bounds = array<i64: 8, 32>}, {pipeline_mode = #tpu.pipeline_mode<synchronous>, transform_indices = @transform_2, window_bounds = array<i64: 8, 32>}, {pipeline_mode = #tpu.pipeline_mode<synchronous>, transform_indices = @transform_3, window_bounds = array<i64: 1, 1>}]} {
    %c0 = arith.constant 0 : index
    %c0_0 = arith.constant 0 : index
    %0 = vector.load %arg2[%c0, %c0_0] : memref<8x32xf32, #tpu.memory_space<vmem>>, vector<8x32xf32>
    %c0_1 = arith.constant 0 : index
    %1 = memref.load %arg1[%c0_1] : memref<4xf32, #tpu.memory_space<smem>>
    %c1 = arith.constant 1 : index
    %2 = memref.load %arg1[%c1] : memref<4xf32, #tpu.memory_space<smem>>
    %c2 = arith.constant 2 : index
    %3 = memref.load %arg1[%c2] : memref<4xf32, #tpu.memory_space<smem>>
    %c3 = arith.constant 3 : index
    %4 = memref.load %arg1[%c3] : memref<4xf32, #tpu.memory_space<smem>>
    %cst = arith.constant dense<0.000000e+00> : vector<8xf32>
    %5 = vector.multi_reduction <add>, %0, %cst [1] : vector<8x32xf32> to vector<8xf32>
    %6 = vector.shape_cast %5 : vector<8xf32> to vector<8x1xf32>
    %cst_2 = arith.constant dense<0.000000e+00> : vector<1xf32>
    %7 = vector.multi_reduction <add>, %6, %cst_2 [0] : vector<8x1xf32> to vector<1xf32>
    %8 = vector.shape_cast %7 : vector<1xf32> to vector<1x1xf32>
    %9 = arith.mulf %0, %0 : vector<8x32xf32>
    %cst_3 = arith.constant dense<0.000000e+00> : vector<8xf32>
    %10 = vector.multi_reduction <add>, %9, %cst_3 [1] : vector<8x32xf32> to vector<8xf32>
    %11 = vector.shape_cast %10 : vector<8xf32> to vector<8x1xf32>
    %cst_4 = arith.constant dense<0.000000e+00> : vector<1xf32>
    %12 = vector.multi_reduction <add>, %11, %cst_4 [0] : vector<8x1xf32> to vector<1xf32>
    %13 = vector.shape_cast %12 : vector<1xf32> to vector<1x1xf32>
    %cst_5 = arith.constant 6.400000e+01 : f32
    %14 = vector.broadcast %cst_5 : f32 to vector<1x1xf32>
    %15 = arith.divf %8, %14 : vector<1x1xf32>
    %cst_6 = arith.constant 6.400000e+01 : f32
    %16 = vector.broadcast %cst_6 : f32 to vector<1x1xf32>
    %17 = arith.mulf %16, %15 : vector<1x1xf32>
    %18 = arith.mulf %17, %15 : vector<1x1xf32>
    %19 = arith.subf %13, %18 : vector<1x1xf32>
    %cst_7 = arith.constant 6.300000e+01 : f32
    %20 = vector.broadcast %cst_7 : f32 to vector<1x1xf32>
    %21 = arith.divf %19, %20 : vector<1x1xf32>
    %cst_8 = arith.constant 9.99999996E-13 : f32
    %22 = vector.broadcast %cst_8 : f32 to vector<1x1xf32>
    %23 = arith.maximumf %21, %22 : vector<1x1xf32>
    %24 = math.rsqrt %23 : vector<1x1xf32>
    %c0_9 = arith.constant 0 : index
    %c0_10 = arith.constant 0 : index
    %25 = vector.load %arg4[%c0_9, %c0_10] : memref<1x1xf32, #tpu.memory_space<vmem>>, vector<1x1xf32>
    tpu.vector_store %arg4[%c0_9, %c0_10], %15 {strides = array<i32>} : memref<1x1xf32, #tpu.memory_space<vmem>>, vector<1x1xf32>,
    %26 = tpu.iota {dimensions = array<i32: 1>} : vector<8x32xi32>
    %c0_i32 = arith.constant 0 : i32
    %27 = vector.broadcast %c0_i32 : i32 to vector<8x32xi32>
    %28 = arith.cmpi eq, %26, %27 : vector<8x32xi32>
    %c1_i32 = arith.constant 1 : i32
    %29 = tpu.dynamic_rotate %0 by %c1_i32 dim 1 : vector<8x32xf32>, i32 -> vector<8x32xf32>
    %cst_11 = arith.constant 0.000000e+00 : f32
    %30 = vector.broadcast %cst_11 : f32 to vector<8x32xf32>
    %31 = arith.select %28, %30, %29 : vector<8x32xi1>, vector<8x32xf32>
    %c31_i32 = arith.constant 31 : i32
    %32 = vector.broadcast %c31_i32 : i32 to vector<8x32xi32>
    %33 = arith.cmpi eq, %26, %32 : vector<8x32xi32>
    %c31_i32_12 = arith.constant 31 : i32
    %34 = tpu.dynamic_rotate %0 by %c31_i32_12 dim 1 : vector<8x32xf32>, i32 -> vector<8x32xf32>
    %cst_13 = arith.constant 0.000000e+00 : f32
    %35 = vector.broadcast %cst_13 : f32 to vector<8x32xf32>
    %36 = arith.select %33, %35, %34 : vector<8x32xi1>, vector<8x32xf32>
    %37 = vector.broadcast %1 : f32 to vector<8x32xf32>
    %38 = arith.mulf %37, %31 : vector<8x32xf32>
    %39 = vector.broadcast %2 : f32 to vector<8x32xf32>
    %40 = arith.mulf %39, %0 : vector<8x32xf32>
    %41 = arith.addf %38, %40 : vector<8x32xf32>
    %42 = vector.broadcast %3 : f32 to vector<8x32xf32>
    %43 = arith.mulf %42, %36 : vector<8x32xf32>
    %44 = arith.addf %41, %43 : vector<8x32xf32>
    %45 = vector.broadcast %4 : f32 to vector<8x32xf32>
    %46 = arith.addf %44, %45 : vector<8x32xf32>
    %47 = arith.subf %0, %46 : vector<8x32xf32>
    %48 = vector.broadcast %24 : vector<1x1xf32> to vector<8x32xf32>
    %49 = arith.mulf %47, %48 : vector<8x32xf32>
    %50 = arith.truncf %49 : vector<8x32xf32> to vector<8x32xbf16>
    %c0_14 = arith.constant 0 : index
    %c0_15 = arith.constant 0 : index
    %51 = vector.load %arg3[%c0_14, %c0_15] : memref<8x32xbf16, #tpu.memory_space<vmem>>, vector<8x32xbf16>
    tpu.vector_store %arg3[%c0_14, %c0_15], %50 {strides = array<i32>} : memref<8x32xbf16, #tpu.memory_space<vmem>>, vector<8x32xbf16>,
    return
  }
  func.func @transform_0(%arg0: i32) -> i32 {
    %c0_i32 = arith.constant 0 : i32
    %c0_i32_0 = arith.constant 0 : i32
    return %c0_i32 : i32
  }
  func.func @transform_1(%arg0: i32) -> (i32, i32) {
    %c0_i32 = arith.constant 0 : i32
    %c0_i32_0 = arith.constant 0 : i32
    %c0_i32_1 = arith.constant 0 : i32
    return %c0_i32, %c0_i32_0 : i32, i32
  }
  func.func @transform_2(%arg0: i32) -> (i32, i32) {
    %c0_i32 = arith.constant 0 : i32
    %c0_i32_0 = arith.constant 0 : i32
    %c0_i32_1 = arith.constant 0 : i32
    return %c0_i32, %c0_i32_0 : i32, i32
  }
  func.func @transform_3(%arg0: i32) -> (i32, i32) {
    %c0_i32 = arith.constant 0 : i32
    %c0_i32_0 = arith.constant 0 : i32
    %c0_i32_1 = arith.constant 0 : i32
    return %c0_i32, %c0_i32_0 : i32, i32
  }
}

module attributes {stable_mosaic.version = 11 : i64} {
  func.func @ma_matmul_kernel(%arg0: i32, %arg1: memref<1x1xf32, #tpu.memory_space<smem>>, %arg2: memref<8x32xbf16, #tpu.memory_space<vmem>>, %arg3: memref<32x128xbf16, #tpu.memory_space<vmem>>, %arg4: memref<1x128xf32, #tpu.memory_space<vmem>>, %arg5: memref<8x128xf32, #tpu.memory_space<vmem>>) attributes {dimension_semantics = [#tpu.dimension_semantics<parallel>], iteration_bounds = array<i64: 1>, scalar_prefetch = 0 : i64, scratch_operands = 0 : i64, tpu.core_type = #tpu.core_type<tc>, window_params = [{transform_indices = @transform_0, window_bounds = array<i64: 1, 1>}, {pipeline_mode = #tpu.pipeline_mode<synchronous>, transform_indices = @transform_1, window_bounds = array<i64: 8, 32>}, {transform_indices = @transform_2, window_bounds = array<i64: 32, 128>}, {transform_indices = @transform_3, window_bounds = array<i64: 1, 128>}, {transform_indices = @transform_4, window_bounds = array<i64: 8, 128>}]} {
    %c0 = arith.constant 0 : index
    %c0_0 = arith.constant 0 : index
    %0 = vector.load %arg2[%c0, %c0_0] : memref<8x32xbf16, #tpu.memory_space<vmem>>, vector<8x32xbf16>
    %c0_1 = arith.constant 0 : index
    %c0_2 = arith.constant 0 : index
    %1 = vector.load %arg3[%c0_1, %c0_2] : memref<32x128xbf16, #tpu.memory_space<vmem>>, vector<32x128xbf16>
    %cst = arith.constant dense<0.000000e+00> : vector<8x128xf32>
    %2 = tpu.matmul %0, %1, %cst {dimension_numbers = #tpu.dot_dimension_numbers<[1], [0], [0], [1], [0, 0, 1, 1], [], []>} : vector<8x32xbf16>, vector<32x128xbf16>, vector<8x128xf32> -> vector<8x128xf32>
    %c0_3 = arith.constant 0 : index
    %c0_4 = arith.constant 0 : index
    %3 = vector.load %arg4[%c0_3, %c0_4] : memref<1x128xf32, #tpu.memory_space<vmem>>, vector<1x128xf32>
    %c0_5 = arith.constant 0 : index
    %c0_6 = arith.constant 0 : index
    %4 = memref.load %arg1[%c0_5, %c0_6] : memref<1x1xf32, #tpu.memory_space<smem>>
    %5 = vector.broadcast %4 : f32 to vector<1x128xf32>
    %6 = arith.addf %3, %5 : vector<1x128xf32>
    %7 = vector.broadcast %6 : vector<1x128xf32> to vector<8x128xf32>
    %8 = arith.addf %2, %7 : vector<8x128xf32>
    %c0_7 = arith.constant 0 : index
    %c0_8 = arith.constant 0 : index
    %9 = vector.load %arg5[%c0_7, %c0_8] : memref<8x128xf32, #tpu.memory_space<vmem>>, vector<8x128xf32>
    tpu.vector_store %arg5[%c0_7, %c0_8], %8 {strides = array<i32>} : memref<8x128xf32, #tpu.memory_space<vmem>>, vector<8x128xf32>,
    return
  }
  func.func @transform_0(%arg0: i32) -> (i32, i32) {
    %c0_i32 = arith.constant 0 : i32
    %c0_i32_0 = arith.constant 0 : i32
    %c0_i32_1 = arith.constant 0 : i32
    return %c0_i32, %c0_i32_0 : i32, i32
  }
  func.func @transform_1(%arg0: i32) -> (i32, i32) {
    %c0_i32 = arith.constant 0 : i32
    %c0_i32_0 = arith.constant 0 : i32
    %c0_i32_1 = arith.constant 0 : i32
    return %c0_i32, %c0_i32_0 : i32, i32
  }
  func.func @transform_2(%arg0: i32) -> (i32, i32) {
    %c0_i32 = arith.constant 0 : i32
    %c0_i32_0 = arith.constant 0 : i32
    return %c0_i32, %arg0 : i32, i32
  }
  func.func @transform_3(%arg0: i32) -> (i32, i32) {
    %c0_i32 = arith.constant 0 : i32
    %c0_i32_0 = arith.constant 0 : i32
    return %c0_i32, %arg0 : i32, i32
  }
  func.func @transform_4(%arg0: i32) -> (i32, i32) {
    %c0_i32 = arith.constant 0 : i32
    %c0_i32_0 = arith.constant 0 : i32
    return %c0_i32, %arg0 : i32, i32
  }
}

</mosaic_0001>

<llo_original>
// kernel: ma_forward.2
$region0: #{ma_forward.2}
  #allocation0 [shape = 'u32[]', space=smem, size = 0x4, offset = 0x4, fixed_abs, tag = 'smem constant byte address 0x4 - core index']
  #allocation1 [shape = 'u32[144,128]{1,0:T(1,128)}', space=vmem, size = 0x12000, scoped, tag = 'internal scratch']
  %s0 = inlined_call_operand.vmem [shape: f32[4], index: 0, kind: input, shape index: {}]
  %s1 = inlined_call_operand.vmem [shape: f32[8,32], index: 1, kind: input, shape index: {}]
  %s2 = inlined_call_operand.vmem [shape: bf16[8,32], index: 2, kind: output, shape index: {0}]
  %s3 = inlined_call_operand.hbm [shape: f32[1,1], index: 3, kind: output, shape index: {1}]
  %4 = xla_tuple %s2, %s3
  %s5 = sld [smem:[#allocation0]]
  $region30: #{ma_forward.2} parent=0
    _
  %s7 = ssub.s32 1, %s5
  %s8 = scalar_select 0, %s7, %s5
  $region1: #{ma_forward.2} parent=0
    #allocation2 [shape = 'u8[512]{0}', space=smem, size = 0x200, scoped, tag = 'input window, operand 0, single buffered']
    #allocation3 [shape = 's32[1]{0}', space=sflag, size = 0x4, scoped, tag = 'scoped memory for ma_forward.2']
    #allocation4 [shape = 's32[1]{0}', space=sflag, size = 0x4, scoped, tag = 'scoped memory for ma_forward.2']
    #allocation5 [shape = 'u8[512]{0}', space=vmem, size = 0x400, scoped, tag = 'output window, operand 1, single buffered']
    %9 = vsyncpa [#allocation4], 0
    %10 = vsyncpa [#allocation3], 0
    // Predicated region
    $region2: #{ma_forward.2} parent=1 // pred_check
      _
    $region3: #{ma_forward.2} parent=1 // pred_check_branch
      %12 = sbr.rel (0) target = $region5
    $region4: #{ma_forward.2} parent=1 // pred_region
      %s14 = ssub.s32 16, 16
      %15 = vsyncadd [#allocation4], %s14
      %s17 = sshll.u32 %s0, 4
      %s18 = int_to_ptr.vmem [resolvable:$true] %s17
      %20 = dma.vmem_to_smem %s18, 16, [#allocation2], [#allocation4]
    $region5: #{ma_forward.2} parent=1 // pred_fallthru
      _
    // Predicated region
    $region6: #{ma_forward.2} parent=1 // pred_check
      _
    $region7: #{ma_forward.2} parent=1 // pred_check_branch
      %22 = sbr.rel (0) target = $region9
    $region8: #{ma_forward.2} parent=1 // pred_region
      _
    $region9: #{ma_forward.2} parent=1 // pred_fallthru
      _
    // Predicated region
    $region10: #{ma_forward.2} parent=1 // pred_check
      _
    $region11: #{ma_forward.2} parent=1 // pred_check_branch
      %24 = sbr.rel (0) target = $region13
    $region12: #{ma_forward.2} parent=1 // pred_region
      %25 = dma.done [#allocation4], 16
    $region13: #{ma_forward.2} parent=1 // pred_fallthru
      _
    %26 = sfence
    %v27 = vld [vmem:[%s1] sm:$0xff]
    %s28 = sld [smem:[#allocation2]]
    %s29 = sld [smem:[#allocation2 + $0x1]]
    %s30 = sld [smem:[#allocation2 + $0x2]]
    %s31 = sld [smem:[#allocation2 + $0x3]]
    %vm32 = vcmask 261120
    %v33 = vsel %vm32, %v27, 0.0
    %34 = vadd.xlane.f32.xlu0 %v33
    %v35 = vpop.xlane.xlu0 %34
    %v36 = vrot.slane %v35, 4
    %v37 = vadd.f32 %v35, %v36
    %v38 = vrot.slane %v37, 2
    %v39 = vadd.f32 %v37, %v38
    %v40 = vrot.slane %v39, 1
    %v41 = vadd.f32 %v39, %v40
    %v42 = vmul.f32 %v27, %v27
    %v43 = vsel %vm32, %v42, 0.0
    %44 = vadd.xlane.f32.xlu0 %v43
    %v45 = vpop.xlane.xlu0 %44
    %v46 = vrot.slane %v45, 4
    %v47 = vadd.f32 %v45, %v46
    %v48 = vrot.slane %v47, 2
    %v49 = vadd.f32 %v47, %v48
    %v50 = vrot.slane %v49, 1
    %v51 = vadd.f32 %v49, %v50
    %v52 = vrcp.pop 64.0
    %v53 = vmul.f32 %v41, %v52
    %v54 = vmul.f32 %v53, 64.0
    %v55 = vmul.f32 %v54, %v53
    %v56 = vsub.f32 %v51, %v55
    %v57 = vrcp.pop 63.0
    %v58 = vmul.f32 %v56, %v57
    %v59 = vmax.f32 %v58, 1e-12
    %v60 = vrsqrt.pop %v59
    %vm61 = vcmask 0
    %62 = vst.msk [vmem:[#allocation5] sm:$0x1] %vm61, %v53
    %v63 = vlaneseq
    %v64 = vand.u32 %v63, 127
    %vm65 = vcmp.eq.s32.totalorder %v64, 0
    %vm66 = vcmask 1047808
    %67 = vrot.lane.b32.xlu0 %v27, 32
    %v68 = vpop.permute.xlu0 %67
    %v69 = vsel %vm66, %v68, %v27
    %70 = vrot.lane.b32.xlu0 %v69, 32
    %v71 = vpop.permute.xlu0 %70
    %v72 = vsel %vm66, %v71, %v27
    %74 = vrot.lane.b32.xlu0 %v72, 97
    %v75 = vpop.permute.xlu0 %74
    %v77 = vsel %vm65, 0.0, %v75
    %vm78 = vcmp.eq.s32.totalorder %v64, 31
    %79 = vrot.lane.b32.xlu0 %v72, 127
    %v80 = vpop.permute.xlu0 %79
    %v82 = vsel %vm78, 0.0, %v80
    %v83 = vstv %s28
    %v84 = vmul.f32 %v83, %v77
    %v85 = vstv %s29
    %v86 = vmul.f32 %v85, %v27
    %v87 = vadd.f32 %v84, %v86
    %v88 = vstv %s30
    %v89 = vmul.f32 %v88, %v82
    %v90 = vadd.f32 %v87, %v89
    %v91 = vstv %s31
    %v92 = vadd.f32 %v90, %v91
    %v93 = vsub.f32 %v27, %v92
    %v94 = vmul.f32 %v93, %v60
    %v95 = vpack.c.bf16 %v94, %v94
    %vm96 = vcmask 257024
    %97 = vst.msk [vmem:[%s2] sm:$0xf] %vm96, %v95
    // Predicated region
    $region14: #{ma_forward.2} parent=1 // pred_check
      _
    $region15: #{ma_forward.2} parent=1 // pred_check_branch
      %99 = sbr.rel (0) target = $region17
    $region16: #{ma_forward.2} parent=1 // pred_region
      _
    $region17: #{ma_forward.2} parent=1 // pred_fallthru
      _
    // Predicated region
    $region18: #{ma_forward.2} parent=1 // pred_check
      _
    $region19: #{ma_forward.2} parent=1 // pred_check_branch
      %101 = sbr.rel (0) target = $region21
    $region20: #{ma_forward.2} parent=1 // pred_region
      %s103 = ssub.s32 16, 16
      %104 = vsyncadd [#allocation3], %s103
      %s106 = sshll.u32 [#allocation5], 4
      %s107 = int_to_ptr.vmem [resolvable:$true] %s106
      %109 = dma.vmem_to_hbm [thread:$0]  %s107, 16, %s3, [#allocation3]
    $region21: #{ma_forward.2} parent=1 // pred_fallthru
      _
    // Predicated region
    $region22: #{ma_forward.2} parent=1 // pred_check
      _
    $region23: #{ma_forward.2} parent=1 // pred_check_branch
      %111 = sbr.rel (0) target = $region25
    $region24: #{ma_forward.2} parent=1 // pred_region
      _
    $region25: #{ma_forward.2} parent=1 // pred_fallthru
      _
    // Predicated region
    $region26: #{ma_forward.2} parent=1 // pred_check
      _
    $region27: #{ma_forward.2} parent=1 // pred_check_branch
      %113 = sbr.rel (0) target = $region29
    $region28: #{ma_forward.2} parent=1 // pred_region
      %114 = dma.done [#allocation3], 16
    $region29: #{ma_forward.2} parent=1 // pred_fallthru
      _
    %115 = vsyncpa [#allocation3], 1
    %116 = vsyncpa [#allocation4], 1

// kernel: ma_forward.3
$region0: #{ma_forward.3}
  #allocation0 [shape = 'u32[]', space=smem, size = 0x4, offset = 0x4, fixed_abs, tag = 'smem constant byte address 0x4 - core index']
  #allocation1 [shape = 'u32[144,128]{1,0:T(1,128)}', space=vmem, size = 0x12000, scoped, tag = 'internal scratch']
  #allocation2 [shape = 'f32[1,1]{1,0:T(1,128)S(6)}', space=smem, size = 0x200, scoped, tag = 'scoped memory for ma_forward.3']
  %s0 = inlined_call_operand.<no memory space> [shape: f32[1,1], index: 0, kind: input, shape index: {}]
  %s1 = inlined_call_operand.vmem [shape: bf16[8,32], index: 1, kind: input, shape index: {}]
  %s2 = inlined_call_operand.vmem [shape: bf16[32,128], index: 2, kind: input, shape index: {}]
  %s3 = inlined_call_operand.vmem [shape: f32[1,128], index: 3, kind: input, shape index: {}]
  %s4 = inlined_call_operand.vmem [shape: f32[8,128], index: 4, kind: output, shape index: {}]
  %s5 = sld [smem:[#allocation0]]
  $region26: #{ma_forward.3} parent=0
    _
  %s7 = ssub.s32 1, %s5
  %s8 = scalar_select 0, %s7, %s5
  %9 = sst [smem:[#allocation2]] %s0
  // Predicated region
  $region2: #{ma_forward.3} parent=0 // pred_check
    _
  $region3: #{ma_forward.3} parent=0 // pred_check_branch
    %11 = sbr.rel (0) target = $region5
  $region4: #{ma_forward.3} parent=0 // pred_region
    _
  $region5: #{ma_forward.3} parent=0 // pred_fallthru
    _
  // Predicated region
  $region6: #{ma_forward.3} parent=0 // pred_check
    _
  $region7: #{ma_forward.3} parent=0 // pred_check_branch
    %13 = sbr.rel (0) target = $region9
  $region8: #{ma_forward.3} parent=0 // pred_region
    _
  $region9: #{ma_forward.3} parent=0 // pred_fallthru
    _
  // Predicated region
  $region10: #{ma_forward.3} parent=0 // pred_check
    _
  $region11: #{ma_forward.3} parent=0 // pred_check_branch
    %15 = sbr.rel (0) target = $region13
  $region12: #{ma_forward.3} parent=0 // pred_region
    _
  $region13: #{ma_forward.3} parent=0 // pred_fallthru
    _
  // Predicated region
  $region14: #{ma_forward.3} parent=0 // pred_check
    _
  $region15: #{ma_forward.3} parent=0 // pred_check_branch
    %17 = sbr.rel (0) target = $region17
  $region16: #{ma_forward.3} parent=0 // pred_region
    _
  $region17: #{ma_forward.3} parent=0 // pred_fallthru
    _
  %v19 = vld [vmem:[%s1] sm:$0xf]
  %v20 = vld [vmem:[%s2] sm:$0xf]
  %v21 = vld [vmem:[%s2 + $0x4] sm:$0xf]
  %v22 = vld [vmem:[%s2 + $0x8] sm:$0xf]
  %v23 = vld [vmem:[%s2 + $0xc] sm:$0xf]
  %v24 = vld [vmem:[%s3] sm:$0x1]
  %s25 = sld [smem:[#allocation2]]
  %v26 = vstv %s25
  %v27 = vadd.f32 %v24, %v26
  %v29 = vlaneseq
  %v30 = vshrl.u32 %v29, 7
  %v31 = vsub.s32 0, %v30
  %v32 = vrot.slane %v27, %v31
  %v38 = vunpack.c.l.b16 %v20
  %v39 = vunpack.c.l.b16 %v21
  %v40 = vunpack.c.l.b16 %v22
  %v41 = vunpack.c.l.b16 %v23
  %v42 = vpack.c.b16 %v39, %v38
  %v43 = vpack.c.b16 %v41, %v40
  %vm46 = vcmask 261120
  %v48 = vsel %vm46, %v19, 0
  %50 = vmatprep.subr.bf16.mxu0 0
  %51 = vmatpush1.bf16.msra.mxu0 %v42
  %52 = vmatprep.subr.bf16.mxu0 0
  %53 = vmatpush1.bf16.msra.mxu0 %v43
  %54 = vmatprep.subr.bf16.mxu0 0
  %55 = vmatpush1.bf16.msra.mxu0 0
  %56 = vmatprep.subr.bf16.mxu0 0
  %57 = vmatpush1.bf16.msra.mxu0 0
  %58 = vmatprep.subr.bf16.mxu0 0
  %59 = vmatpush1.bf16.msra.mxu0 0
  %60 = vmatprep.subr.bf16.mxu0 0
  %61 = vmatpush1.bf16.msra.mxu0 0
  %62 = vmatprep.subr.bf16.mxu0 0
  %63 = vmatpush1.bf16.msra.mxu0 0
  %64 = vmatprep.subr.bf16.mxu0 0
  %65 = vmatpush1.bf16.msra.mxu0 0
  %66 = vmatprep.subr.bf16.mxu0 0
  %67 = vmatpush1.bf16.msra.mxu0 0
  %68 = vmatprep.subr.bf16.mxu0 0
  %69 = vmatpush1.bf16.msra.mxu0 0
  %70 = vmatprep.subr.bf16.mxu0 0
  %71 = vmatpush1.bf16.msra.mxu0 0
  %72 = vmatprep.subr.bf16.mxu0 0
  %73 = vmatpush1.bf16.msra.mxu0 0
  %74 = vmatprep.subr.bf16.mxu0 0
  %75 = vmatpush1.bf16.msra.mxu0 0
  %76 = vmatprep.subr.bf16.mxu0 0
  %77 = vmatpush1.bf16.msra.mxu0 0
  %78 = vmatprep.subr.bf16.mxu0 0
  %79 = vmatpush1.bf16.msra.mxu0 0
  %80 = vmatprep.subr.bf16.mxu0 0
  %81 = vmatpush1.bf16.msra.mxu0 0
  %82 = vmatprep.mubr.bf16.mxu0 0
  %83 = vmatmul.mubr.bf16.gmra.mrb[0].mxu0 %v48
  %v84 = vpop.f32.mrb[0].mxu0
  %v85 = vadd.f32 %v32, %v84
  %v86 = vpop.f32.mrb[0].mxu0
  %v87 = vpop.f32.mrb[0].mxu0
  %v88 = vpop.f32.mrb[0].mxu0
  %89 = vdwg.mxu0
  %90 = vst [vmem:[%s4] sm:$0xff] %v85
  // Predicated region
  $region18: #{ma_forward.3} parent=0 // pred_check
    _
  $region19: #{ma_forward.3} parent=0 // pred_check_branch
    %92 = sbr.rel (0) target = $region21
  $region20: #{ma_forward.3} parent=0 // pred_region
    _
  $region21: #{ma_forward.3} parent=0 // pred_fallthru
    _
  // Predicated region
  $region22: #{ma_forward.3} parent=0 // pred_check
    _
  $region23: #{ma_forward.3} parent=0 // pred_check_branch
    %94 = sbr.rel (0) target = $region25
  $region24: #{ma_forward.3} parent=0 // pred_region
    _
  $region25: #{ma_forward.3} parent=0 // pred_fallthru
    _

</llo_original>
